<compile_context>
chip_gen: v6e
topology: v6e:2x2x1
jax: 0.10.0
libtpu: 0.0.40
codegen_flags: <defaults>
</compile_context>

<pallas_src>
import functools

import jax
import jax.numpy as jnp
from jax.experimental import pallas as pl
from jax.experimental.pallas import tpu as pltpu

_LANES = 128
_SUBLANES = 8
_BLOCK_ROWS = 2048   # (2048, 128) f32 = 1 MiB/block; 2 inputs x 2 buffers = 4 MiB VMEM
_N_SPLIT = 2         # leading 'parallel' axis -> both TensorCores on v7x


def _round_up(a, b):
    return (a + b - 1) // b * b


def _loss_sums_kernel(n_ref, x_ref, t_ref, out_ref, *,
                      blocks_per_split, compute_bce, compute_thr):
    """Accumulate per-lane (8,128) partial sums for the loss reductions.

    Output slab layout (block = (1, n_sums, 8, 128), resident across k):
      index 0: intersection   ((x > 0.5) * t for 'dice', x * t for mixed)
      index 1: sum(x)
      index 2: sum(t)
      index 3: sum(elementwise BCEWithLogits)   (mixed variants only)
    """
    c = pl.program_id(0)   # parallel split axis
    k = pl.program_id(1)   # reduction axis (arbitrary)

    @pl.when(k == 0)
    def _init():
        out_ref[...] = jnp.zeros_like(out_ref)

    n = n_ref[0]

    block_rows = x_ref.shape[0]
    lanes = x_ref.shape[1]

    x = x_ref[...].astype(jnp.float32)
    t = t_ref[...].astype(jnp.float32)

    # Validity mask from the *global* element index: handles the ragged tail
    # of the last block and any fully-out-of-range (clamped) blocks on the
    # split axis.  (int32 index: fine for < 2^31 elements.)
    row_off = (c * blocks_per_split + k) * block_rows
    row_idx = jax.lax.broadcasted_iota(jnp.int32, (block_rows, lanes), 0)
    lane_idx = jax.lax.broadcasted_iota(jnp.int32, (block_rows, lanes), 1)
    gidx = (row_off + row_idx) * lanes + lane_idx
    valid = gidx < n

    x = jnp.where(valid, x, 0.0)
    t = jnp.where(valid, t, 0.0)

    sub = block_rows // _SUBLANES

    def vpartial(v):
        # (block_rows, 128) -> (8, 128): pure cross-vreg VPU adds, no XLU.
        return jnp.sum(v.reshape(sub, _SUBLANES, lanes), axis=0)

    if compute_thr:
        inter = jnp.where(x > 0.5, t, 0.0)       # (x > 0.5).float() * t
    else:
        inter = x * t                            # soft intersection
    out_ref[0, 0] += vpartial(inter)
    out_ref[0, 1] += vpartial(x)
    out_ref[0, 2] += vpartial(t)

    if compute_bce:
        # Numerically stable BCEWithLogits: max(x,0) - x*t + log1p(exp(-|x|))
        bce = jnp.maximum(x, 0.0) - x * t + jnp.log1p(jnp.exp(-jnp.abs(x)))
        out_ref[0, 3] += vpartial(jnp.where(valid, bce, 0.0))


def _reduction_sums(inputs, targets, *, compute_bce, compute_thr):
    """Run the Pallas reduction; returns (sums[n_sums], n) as f32."""
    x = jnp.reshape(inputs, (-1,))
    t = jnp.reshape(targets, (-1,))
    n = x.shape[0]

    # Pad only so the flat length is a multiple of 8*128 (keeps rows a
    # multiple of 8).  For typical volume shapes this is a no-op (no copy);
    # the ragged tail inside the last block is handled by the in-kernel mask.
    n_pad = _round_up(n, _SUBLANES * _LANES)
    if n_pad != n:
        x = jnp.pad(x, (0, n_pad - n))
        t = jnp.pad(t, (0, n_pad - n))

    rows = n_pad // _LANES
    x2 = x.reshape(rows, _LANES)
    t2 = t.reshape(rows, _LANES)

    block_rows = min(_BLOCK_ROWS, rows)
    blocks_total = pl.cdiv(rows, block_rows)
    n_split = min(_N_SPLIT, blocks_total)
    blocks_per_split = pl.cdiv(blocks_total, n_split)

    n_sums = 4 if compute_bce else 3

    kernel = functools.partial(
        _loss_sums_kernel,
        blocks_per_split=blocks_per_split,
        compute_bce=compute_bce,
        compute_thr=compute_thr,
    )

    # index_maps receive the scalar-prefetch ref as a trailing positional arg.
    in_spec = pl.BlockSpec(
        (block_rows, _LANES),
        lambda c, k, n_ref: (c * blocks_per_split + k, 0))
    out_spec = pl.BlockSpec(
        (1, n_sums, _SUBLANES, _LANES),
        lambda c, k, n_ref: (c, 0, 0, 0))

    partials = pl.pallas_call(
        kernel,
        out_shape=jax.ShapeDtypeStruct(
            (n_split, n_sums, _SUBLANES, _LANES), jnp.float32),
        grid_spec=pltpu.PrefetchScalarGridSpec(
            num_scalar_prefetch=1,
            grid=(n_split, blocks_per_split),
            in_specs=[in_spec, in_spec],
            out_specs=out_spec,
        ),
        compiler_params=pltpu.CompilerParams(
            dimension_semantics=("parallel", "arbitrary")),
    )(jnp.array([n], jnp.int32), x2, t2)

    # Tiny final reduction (n_split * n_sums * 8 * 128 elements) in plain XLA.
    sums = jnp.sum(partials, axis=(0, 2, 3))
    return sums, jnp.float32(n)


@functools.partial(jax.jit, static_argnames=("loss_type",))
def loss_forward(inputs, targets, loss_type):
    """JAX/Pallas equivalent of Loss(type).forward(inputs, targets)."""
    if loss_type == "dice":
        sums, _ = _reduction_sums(inputs, targets,
                                  compute_bce=False, compute_thr=True)
        inter, sx, st = sums[0], sums[1], sums[2]
        smooth = 1e-06
        return 1.0 - (2.0 * inter + smooth) / (sx + st + smooth)
    elif loss_type in ("mixed dice", "mixed dice2"):
        sums, n = _reduction_sums(inputs, targets,
                                  compute_bce=True, compute_thr=False)
        inter, sx, st, bce_sum = sums[0], sums[1], sums[2], sums[3]
        smooth = 1.0
        ce = bce_sum / n                      # BCEWithLogitsLoss reduction='mean'
        d = (2.0 * inter + smooth) / (sx + st + smooth)
        if loss_type == "mixed dice":
            return ce - d
        return 0.3 * ce - (1.0 - 0.3) * d
    else:
        raise ValueError(f"unknown loss type: {loss_type}")


if __name__ == "__main__":
    # Unet3D-style tensors: (N, C, D, H, W) = (2, 1, 8, 16, 16) -> 4096 elements.
    key = jax.random.PRNGKey(0)
    k1, k2 = jax.random.split(key)

    shape = (2, 1, 8, 16, 16)
    logits = jax.random.normal(k1, shape, dtype=jnp.float32)           # raw logits
    probs = jax.nn.sigmoid(logits)                                     # probabilities
    targets = (jax.random.uniform(k2, shape) > 0.5).astype(jnp.float32)

    # 'dice' expects probabilities; 'mixed dice' / 'mixed dice2' expect logits.
    l_dice = jax.block_until_ready(loss_forward(probs, targets, "dice"))
    l_mixed = jax.block_until_ready(loss_forward(logits, targets, "mixed dice"))
    l_mixed2 = jax.block_until_ready(loss_forward(logits, targets, "mixed dice2"))

    # Plain-JAX references for a quick sanity check.
    def ref_dice(x, t):
        xf, tf = x.reshape(-1), t.reshape(-1)
        s = 1e-06
        inter = jnp.sum((xf > 0.5).astype(jnp.float32) * tf)
        return 1.0 - (2 * inter + s) / (jnp.sum(xf) + jnp.sum(tf) + s)

    def ref_bce_mean(x, t):
        return jnp.mean(jnp.maximum(x, 0.0) - x * t
                        + jnp.log1p(jnp.exp(-jnp.abs(x))))

    def ref_mixed(x, t):
        xf, tf = x.reshape(-1), t.reshape(-1)
        s = 1.0
        inter = jnp.sum(xf * tf)
        d = (2 * inter + s) / (jnp.sum(xf) + jnp.sum(tf) + s)
        return ref_bce_mean(x, t) - d

    def ref_mixed2(x, t):
        xf, tf = x.reshape(-1), t.reshape(-1)
        s = 1.0
        inter = jnp.sum(xf * tf)
        d = (2 * inter + s) / (jnp.sum(xf) + jnp.sum(tf) + s)
        return 0.3 * ref_bce_mean(x, t) - 0.7 * d

    assert jnp.allclose(l_dice, ref_dice(probs, targets), rtol=1e-5, atol=1e-5)
    assert jnp.allclose(l_mixed, ref_mixed(logits, targets), rtol=1e-5, atol=1e-5)
    assert jnp.allclose(l_mixed2, ref_mixed2(logits, targets), rtol=1e-5, atol=1e-5)

    print("KERNEL_OK")
</pallas_src>

<mosaic_0001>
module attributes {stable_mosaic.version = 11 : i64} {
  func.func @_loss_sums_kernel(%arg0: i32, %arg1: i32, %arg2: memref<1xi32, #tpu.memory_space<smem>>, %arg3: memref<32x128xf32, #tpu.memory_space<vmem>>, %arg4: memref<32x128xf32, #tpu.memory_space<vmem>>, %arg5: memref<1x3x8x128xf32, #tpu.memory_space<vmem>>) attributes {dimension_semantics = [#tpu.dimension_semantics<parallel>, #tpu.dimension_semantics<arbitrary>], iteration_bounds = array<i64: 1, 1>, scalar_prefetch = 1 : i64, scratch_operands = 0 : i64, tpu.core_type = #tpu.core_type<tc>, window_params = [{transform_indices = @transform_0, window_bounds = array<i64: 32, 128>}, {transform_indices = @transform_1, window_bounds = array<i64: 32, 128>}, {transform_indices = @transform_2, window_bounds = array<i64: 1, 3, 8, 128>}]} {
    %c0_i32 = arith.constant 0 : i32
    %0 = arith.cmpi eq, %arg1, %c0_i32 : i32
    %1 = arith.extui %0 : i1 to i32
    %c0_i32_0 = arith.constant 0 : i32
    %2 = arith.cmpi ne, %1, %c0_i32_0 : i32
    scf.if %2 {
      %cst_33 = arith.constant 0.000000e+00 : f32
      %50 = vector.broadcast %cst_33 : f32 to vector<1x3x8x128xf32>
      %c0_34 = arith.constant 0 : index
      %c0_35 = arith.constant 0 : index
      %c0_36 = arith.constant 0 : index
      %c0_37 = arith.constant 0 : index
      %51 = vector.load %arg5[%c0_34, %c0_35, %c0_36, %c0_37] : memref<1x3x8x128xf32, #tpu.memory_space<vmem>>, vector<1x3x8x128xf32>
      tpu.vector_store %arg5[%c0_34, %c0_35, %c0_36, %c0_37], %50 {strides = array<i32>} : memref<1x3x8x128xf32, #tpu.memory_space<vmem>>, vector<1x3x8x128xf32>,
    } else {
    }
    %c0 = arith.constant 0 : index
    %3 = memref.load %arg2[%c0] : memref<1xi32, #tpu.memory_space<smem>>
    %c0_1 = arith.constant 0 : index
    %c0_2 = arith.constant 0 : index
    %4 = vector.load %arg3[%c0_1, %c0_2] : memref<32x128xf32, #tpu.memory_space<vmem>>, vector<32x128xf32>
    %c0_3 = arith.constant 0 : index
    %c0_4 = arith.constant 0 : index
    %5 = vector.load %arg4[%c0_3, %c0_4] : memref<32x128xf32, #tpu.memory_space<vmem>>, vector<32x128xf32>
    %c1_i32 = arith.constant 1 : i32
    %6 = arith.muli %arg0, %c1_i32 : i32
    %7 = arith.addi %6, %arg1 : i32
    %c32_i32 = arith.constant 32 : i32
    %8 = arith.muli %7, %c32_i32 : i32
    %9 = tpu.iota {dimensions = array<i32: 0>} : vector<32x128xi32>
    %10 = tpu.iota {dimensions = array<i32: 1>} : vector<32x128xi32>
    %11 = vector.broadcast %8 : i32 to vector<32x128xi32>
    %12 = arith.addi %11, %9 : vector<32x128xi32>
    %c128_i32 = arith.constant 128 : i32
    %13 = vector.broadcast %c128_i32 : i32 to vector<32x128xi32>
    %14 = arith.muli %12, %13 : vector<32x128xi32>
    %15 = arith.addi %14, %10 : vector<32x128xi32>
    %16 = vector.broadcast %3 : i32 to vector<32x128xi32>
    %17 = arith.cmpi slt, %15, %16 : vector<32x128xi32>
    %cst = arith.constant 0.000000e+00 : f32
    %18 = vector.broadcast %cst : f32 to vector<32x128xf32>
    %19 = arith.select %17, %4, %18 : vector<32x128xi1>, vector<32x128xf32>
    %cst_5 = arith.constant 0.000000e+00 : f32
    %20 = vector.broadcast %cst_5 : f32 to vector<32x128xf32>
    %21 = arith.select %17, %5, %20 : vector<32x128xi1>, vector<32x128xf32>
    %cst_6 = arith.constant 5.000000e-01 : f32
    %22 = vector.broadcast %cst_6 : f32 to vector<32x128xf32>
    %23 = arith.cmpf ogt, %19, %22 : vector<32x128xf32>
    %cst_7 = arith.constant 0.000000e+00 : f32
    %24 = vector.broadcast %cst_7 : f32 to vector<32x128xf32>
    %25 = arith.select %23, %21, %24 : vector<32x128xi1>, vector<32x128xf32>
    %c0_8 = arith.constant 0 : index
    %c0_9 = arith.constant 0 : index
    %c0_10 = arith.constant 0 : index
    %c0_11 = arith.constant 0 : index
    %26 = vector.load %arg5[%c0_8, %c0_9, %c0_10, %c0_11] : memref<1x3x8x128xf32, #tpu.memory_space<vmem>>, vector<1x1x8x128xf32>
    %27 = vector.shape_cast %26 : vector<1x1x8x128xf32> to vector<8x128xf32>
    %28 = vector.shape_cast %25 : vector<32x128xf32> to vector<4x8x128xf32>
    %cst_12 = arith.constant dense<0.000000e+00> : vector<8x128xf32>
    %29 = vector.multi_reduction <add>, %28, %cst_12 [0] : vector<4x8x128xf32> to vector<8x128xf32>
    %30 = arith.addf %27, %29 : vector<8x128xf32>
    %c0_13 = arith.constant 0 : index
    %c0_14 = arith.constant 0 : index
    %c0_15 = arith.constant 0 : index
    %c0_16 = arith.constant 0 : index
    %31 = vector.load %arg5[%c0_13, %c0_14, %c0_15, %c0_16] : memref<1x3x8x128xf32, #tpu.memory_space<vmem>>, vector<1x1x8x128xf32>
    %32 = vector.shape_cast %31 : vector<1x1x8x128xf32> to vector<8x128xf32>
    %33 = vector.shape_cast %30 : vector<8x128xf32> to vector<1x1x8x128xf32>
    tpu.vector_store %arg5[%c0_13, %c0_14, %c0_15, %c0_16], %33 {strides = array<i32>} : memref<1x3x8x128xf32, #tpu.memory_space<vmem>>, vector<1x1x8x128xf32>,
    %c0_17 = arith.constant 0 : index
    %c1 = arith.constant 1 : index
    %c0_18 = arith.constant 0 : index
    %c0_19 = arith.constant 0 : index
    %34 = vector.load %arg5[%c0_17, %c1, %c0_18, %c0_19] : memref<1x3x8x128xf32, #tpu.memory_space<vmem>>, vector<1x1x8x128xf32>
    %35 = vector.shape_cast %34 : vector<1x1x8x128xf32> to vector<8x128xf32>
    %36 = vector.shape_cast %19 : vector<32x128xf32> to vector<4x8x128xf32>
    %cst_20 = arith.constant dense<0.000000e+00> : vector<8x128xf32>
    %37 = vector.multi_reduction <add>, %36, %cst_20 [0] : vector<4x8x128xf32> to vector<8x128xf32>
    %38 = arith.addf %35, %37 : vector<8x128xf32>
    %c0_21 = arith.constant 0 : index
    %c1_22 = arith.constant 1 : index
    %c0_23 = arith.constant 0 : index
    %c0_24 = arith.constant 0 : index
    %39 = vector.load %arg5[%c0_21, %c1_22, %c0_23, %c0_24] : memref<1x3x8x128xf32, #tpu.memory_space<vmem>>, vector<1x1x8x128xf32>
    %40 = vector.shape_cast %39 : vector<1x1x8x128xf32> to vector<8x128xf32>
    %41 = vector.shape_cast %38 : vector<8x128xf32> to vector<1x1x8x128xf32>
    tpu.vector_store %arg5[%c0_21, %c1_22, %c0_23, %c0_24], %41 {strides = array<i32>} : memref<1x3x8x128xf32, #tpu.memory_space<vmem>>, vector<1x1x8x128xf32>,
    %c0_25 = arith.constant 0 : index
    %c2 = arith.constant 2 : index
    %c0_26 = arith.constant 0 : index
    %c0_27 = arith.constant 0 : index
    %42 = vector.load %arg5[%c0_25, %c2, %c0_26, %c0_27] : memref<1x3x8x128xf32, #tpu.memory_space<vmem>>, vector<1x1x8x128xf32>
    %43 = vector.shape_cast %42 : vector<1x1x8x128xf32> to vector<8x128xf32>
    %44 = vector.shape_cast %21 : vector<32x128xf32> to vector<4x8x128xf32>
    %cst_28 = arith.constant dense<0.000000e+00> : vector<8x128xf32>
    %45 = vector.multi_reduction <add>, %44, %cst_28 [0] : vector<4x8x128xf32> to vector<8x128xf32>
    %46 = arith.addf %43, %45 : vector<8x128xf32>
    %c0_29 = arith.constant 0 : index
    %c2_30 = arith.constant 2 : index
    %c0_31 = arith.constant 0 : index
    %c0_32 = arith.constant 0 : index
    %47 = vector.load %arg5[%c0_29, %c2_30, %c0_31, %c0_32] : memref<1x3x8x128xf32, #tpu.memory_space<vmem>>, vector<1x1x8x128xf32>
    %48 = vector.shape_cast %47 : vector<1x1x8x128xf32> to vector<8x128xf32>
    %49 = vector.shape_cast %46 : vector<8x128xf32> to vector<1x1x8x128xf32>
    tpu.vector_store %arg5[%c0_29, %c2_30, %c0_31, %c0_32], %49 {strides = array<i32>} : memref<1x3x8x128xf32, #tpu.memory_space<vmem>>, vector<1x1x8x128xf32>,
    return
  }
  func.func @transform_0(%arg0: i32, %arg1: i32, %arg2: memref<1xi32, #tpu.memory_space<smem>>) -> (i32, i32) {
    %c1_i32 = arith.constant 1 : i32
    %0 = arith.muli %arg0, %c1_i32 : i32
    %1 = arith.addi %0, %arg1 : i32
    %c0_i32 = arith.constant 0 : i32
    %c0_i32_0 = arith.constant 0 : i32
    return %1, %c0_i32 : i32, i32
  }
  func.func @transform_1(%arg0: i32, %arg1: i32, %arg2: memref<1xi32, #tpu.memory_space<smem>>) -> (i32, i32) {
    %c1_i32 = arith.constant 1 : i32
    %0 = arith.muli %arg0, %c1_i32 : i32
    %1 = arith.addi %0, %arg1 : i32
    %c0_i32 = arith.constant 0 : i32
    %c0_i32_0 = arith.constant 0 : i32
    return %1, %c0_i32 : i32, i32
  }
  func.func @transform_2(%arg0: i32, %arg1: i32, %arg2: memref<1xi32, #tpu.memory_space<smem>>) -> (i32, i32, i32, i32) {
    %c0_i32 = arith.constant 0 : i32
    %c0_i32_0 = arith.constant 0 : i32
    %c0_i32_1 = arith.constant 0 : i32
    %c0_i32_2 = arith.constant 0 : i32
    return %arg0, %c0_i32, %c0_i32_0, %c0_i32_1 : i32, i32, i32, i32
  }
}

</mosaic_0001>

<llo_original>
// kernel: loss_forward.1
$region0: #{loss_forward.1}
  #allocation0 [shape = 'u32[]', space=smem, size = 0x4, offset = 0x4, fixed_abs, tag = 'smem constant byte address 0x4 - core index']
  #allocation1 [shape = 'u32[144,128]{1,0:T(1,128)}', space=vmem, size = 0x12000, scoped, tag = 'internal scratch']
  #allocation2 [shape = 's32[1]{0}', space=sflag, size = 0x4, scoped, tag = 'scoped memory for loss_forward.1']
  #allocation3 [shape = 's32[1]{0:T(128)S(6)}', space=smem, size = 0x200, scoped, tag = 'prefetched SMEM operand 0']
  %s0 = inlined_call_operand.<no memory space> [shape: s32[1], index: 0, kind: input, shape index: {}]
  %s1 = inlined_call_operand.vmem [shape: f32[32,128], index: 1, kind: input, shape index: {}]
  %s2 = inlined_call_operand.vmem [shape: f32[32,128], index: 2, kind: input, shape index: {}]
  %s3 = inlined_call_operand.vmem [shape: f32[1,3,8,128], index: 3, kind: output, shape index: {}]
  %s4 = sld [smem:[#allocation0]]
  $region22: #{loss_forward.1} parent=0
    _
  %s6 = ssub.s32 1, %s4
  %s7 = scalar_select 0, %s6, %s4
  %8 = sst [smem:[#allocation3]] %s0
  // Predicated region
  $region2: #{loss_forward.1} parent=0 // pred_check
    _
  $region3: #{loss_forward.1} parent=0 // pred_check_branch
    %10 = sbr.rel (0) target = $region5
  $region4: #{loss_forward.1} parent=0 // pred_region
    %s11 = sadd.s32 0, 0
    %s12 = smul.u32 4, %s11
    %p13 = scmp.lt.s32.totalorder %s12, 3
    %s14 = scalar_select %p13, %s12, 3
    %s15 = smul.addr %s14, 8
    %s16 = scalar_lea.vmem %s1, %s15
    %s17 = sadd.s32 0, 0
    %s18 = smul.u32 4, %s17
  $region5: #{loss_forward.1} parent=0 // pred_fallthru
    _
  // Predicated region
  $region6: #{loss_forward.1} parent=0 // pred_check
    _
  $region7: #{loss_forward.1} parent=0 // pred_check_branch
    %20 = sbr.rel (0) target = $region9
  $region8: #{loss_forward.1} parent=0 // pred_region
    %s21 = sadd.s32 0, 0
    %s22 = smul.u32 4, %s21
    %p23 = scmp.lt.s32.totalorder %s22, 3
    %s24 = scalar_select %p23, %s22, 3
    %s25 = smul.addr %s24, 8
    %s26 = scalar_lea.vmem %s2, %s25
    %s27 = sadd.s32 0, 0
    %s28 = smul.u32 4, %s27
  $region9: #{loss_forward.1} parent=0 // pred_fallthru
    _
  %s29 = sadd.s32 0, 0
  %s30 = smul.u32 4, %s29
  %p31 = scmp.lt.s32.totalorder %s30, 3
  %s32 = scalar_select %p31, %s30, 3
  %s33 = smul.addr %s32, 8
  %s34 = scalar_lea.vmem %s1, %s33
  %s35 = sadd.s32 0, 0
  %s36 = smul.u32 4, %s35
  %p37 = scmp.lt.s32.totalorder %s36, 3
  %s38 = scalar_select %p37, %s36, 3
  %s39 = smul.addr %s38, 8
  %s40 = scalar_lea.vmem %s2, %s39
  %s41 = sadd.s32 0, 0
  %s42 = smul.u32 4, %s41
  %p43 = scmp.lt.s32.totalorder %s42, 3
  %s44 = scalar_select %p43, %s42, 3
  %s45 = smul.addr %s44, 8
  %s46 = scalar_lea.vmem %s1, %s45
  %s47 = sadd.s32 0, 0
  %s48 = smul.u32 4, %s47
  %s49 = sadd.s32 0, 0
  %s50 = smul.u32 4, %s49
  %p51 = scmp.lt.s32.totalorder %s50, 3
  %s52 = scalar_select %p51, %s50, 3
  %s53 = smul.addr %s52, 8
  %s54 = scalar_lea.vmem %s2, %s53
  %s55 = sadd.s32 0, 0
  %s56 = smul.u32 4, %s55
  %p57 = scmp.eq.s32.totalorder 0, 0
  // Predicated region
  $region10: #{loss_forward.1} parent=0 // pred_check
    %p58 = pneg %p57
  $region11: #{loss_forward.1} parent=0 // pred_check_branch
    %60 = sbr.rel (%p58) target = $region13
  $region12: #{loss_forward.1} parent=0 // pred_region
    %61 = vst [vmem:[%s3] sm:$0xff] 0.0
    %62 = vst [vmem:[%s3 + $0x8] sm:$0xff] 0.0
    %63 = vst [vmem:[%s3 + $0x10] sm:$0xff] 0.0
  $region13: #{loss_forward.1} parent=0 // pred_fallthru
    _
  %s64 = sld [smem:[#allocation3]]
  %v65 = vld [vmem:[%s46] sm:$0xff]
  %v66 = vld [vmem:[%s46 + $0x8] sm:$0xff]
  %v67 = vld [vmem:[%s46 + $0x10] sm:$0xff]
  %v68 = vld [vmem:[%s46 + $0x18] sm:$0xff]
  %v69 = vld [vmem:[%s54] sm:$0xff]
  %v70 = vld [vmem:[%s54 + $0x8] sm:$0xff]
  %v71 = vld [vmem:[%s54 + $0x10] sm:$0xff]
  %v72 = vld [vmem:[%s54 + $0x18] sm:$0xff]
  %s73 = sadd.s32 0, 0
  %s74 = smul.u32 %s73, 32
  %v75 = vlaneseq
  %v76 = vshrl.u32 %v75, 7
  %v77 = vadd.s32 %v76, 8
  %v78 = vadd.s32 %v76, 16
  %v79 = vadd.s32 %v76, 24
  %v80 = vlaneseq
  %v81 = vand.u32 %v80, 127
  %v82 = vstv %s74
  %v83 = vadd.s32 %v82, %v76
  %v84 = vadd.s32 %v82, %v77
  %v85 = vadd.s32 %v82, %v78
  %v86 = vadd.s32 %v82, %v79
  %v87 = vmul.u32 %v83, 128
  %v88 = vmul.u32 %v84, 128
  %v89 = vmul.u32 %v85, 128
  %v90 = vmul.u32 %v86, 128
  %v91 = vadd.s32 %v87, %v81
  %v92 = vadd.s32 %v88, %v81
  %v93 = vadd.s32 %v89, %v81
  %v94 = vadd.s32 %v90, %v81
  %v95 = vstv %s64
  %vm96 = vcmp.lt.s32.totalorder %v91, %v95
  %vm97 = vcmp.lt.s32.totalorder %v92, %v95
  %vm98 = vcmp.lt.s32.totalorder %v93, %v95
  %vm99 = vcmp.lt.s32.totalorder %v94, %v95
  %v100 = vsel %vm96, %v65, 0.0
  %v101 = vsel %vm97, %v66, 0.0
  %v102 = vsel %vm98, %v67, 0.0
  %v103 = vsel %vm99, %v68, 0.0
  %v104 = vsel %vm96, %v69, 0.0
  %v105 = vsel %vm97, %v70, 0.0
  %v106 = vsel %vm98, %v71, 0.0
  %v107 = vsel %vm99, %v72, 0.0
  %vm108 = vcmp.gt.f32.partialorder %v100, 0.5
  %vm109 = vcmp.gt.f32.partialorder %v101, 0.5
  %vm110 = vcmp.gt.f32.partialorder %v102, 0.5
  %vm111 = vcmp.gt.f32.partialorder %v103, 0.5
  %v112 = vsel %vm108, %v104, 0.0
  %v113 = vsel %vm109, %v105, 0.0
  %v114 = vsel %vm110, %v106, 0.0
  %v115 = vsel %vm111, %v107, 0.0
  %v116 = vld [vmem:[%s3] sm:$0xff]
  %v117 = vadd.f32 %v112, %v113
  %v118 = vadd.f32 %v117, %v114
  %v119 = vadd.f32 %v118, %v115
  %v120 = vadd.f32 %v116, %v119
  %121 = vst [vmem:[%s3] sm:$0xff] %v120
  %s122 = scalar_lea.vmem %s3, 8
  %v123 = vld [vmem:[%s122] sm:$0xff]
  %v124 = vadd.f32 %v100, %v101
  %v125 = vadd.f32 %v124, %v102
  %v126 = vadd.f32 %v125, %v103
  %v127 = vadd.f32 %v123, %v126
  %128 = vst [vmem:[%s122] sm:$0xff] %v127
  %s129 = scalar_lea.vmem %s3, 16
  %v130 = vld [vmem:[%s129] sm:$0xff]
  %v131 = vadd.f32 %v104, %v105
  %v132 = vadd.f32 %v131, %v106
  %v133 = vadd.f32 %v132, %v107
  %v134 = vadd.f32 %v130, %v133
  %135 = vst [vmem:[%s129] sm:$0xff] %v134
  // Predicated region
  $region14: #{loss_forward.1} parent=0 // pred_check
    _
  $region15: #{loss_forward.1} parent=0 // pred_check_branch
    %137 = sbr.rel (0) target = $region17
  $region16: #{loss_forward.1} parent=0 // pred_region
    _
  $region17: #{loss_forward.1} parent=0 // pred_fallthru
    _
  // Predicated region
  $region18: #{loss_forward.1} parent=0 // pred_check
    _
  $region19: #{loss_forward.1} parent=0 // pred_check_branch
    %139 = sbr.rel (0) target = $region21
  $region20: #{loss_forward.1} parent=0 // pred_region
    _
  $region21: #{loss_forward.1} parent=0 // pred_fallthru
    _

</llo_original>
